<compile_context>
chip_gen: v5e
topology: v5e:2x2
jax: 0.10.0
libtpu: 0.0.40
codegen_flags: <defaults>
</compile_context>

<pallas_src>
import math
import numpy as np
import jax
import jax.numpy as jnp
from jax.experimental import pallas as pl
from jax.experimental.pallas import tpu as pltpu

# ---------------- synthetic cfg (deterministic, in-script) ----------------
BBOX_REG_WEIGHTS = (10.0, 10.0, 5.0, 5.0)   # cfg.ROI_BOX.BBOX_REG_WEIGHTS
PROB_THRESHOLD = 0.05                        # cfg.ROI_BOX.PROB_THRESHOLD
NMS_THRESHOLD = 0.5                          # cfg.ROI_BOX.NMS_THRESHOLD
DETECTIONS_PER_IMAGE = 100                   # cfg.ROI_BOX.DETECTIONS_PER_IMAGE
NUM_CLASSES = 5                              # includes background class 0
HIDDEN = 32

_MAX_OFFSET = math.log(1000.0 / 16.0)
LANE = 128

# lane layout of the single input slab row (128 lanes):
#   [0 : C)                    pooled feature vector
#   [GEOM_BASE : GEOM_BASE+6)  px1, py1, px2, py2, img_w, img_h
GEOM_BASE = 64
# second-matmul output layout (256 lanes): [0,128) logits, [128,256) reg plane
#   reg plane: dx@0, dy@REG_STRIDE, dw@2*REG_STRIDE, dh@3*REG_STRIDE
REG_STRIDE = 32
# output slab layout (128 lanes): probs@0, x1@OUT_STRIDE, y1@2*, x2@3*, y2@4*
OUT_STRIDE = 16

assert NUM_CLASSES <= OUT_STRIDE and NUM_CLASSES <= REG_STRIDE
assert 5 * OUT_STRIDE <= LANE and 4 * REG_STRIDE <= LANE
assert HIDDEN <= LANE and GEOM_BASE + 6 <= LANE


def _round_up(x, m):
    return (x + m - 1) // m * m


# --------- fused kernel: FC -> ReLU -> heads -> softmax -> decode -> pack ---------
def _fused_roi_kernel(x_ref, w1_ref, b1_ref, w2_ref, b2_ref, out_ref):
    K = NUM_CLASSES

    # --- shared FC + ReLU (MXU). Geometry lanes hit all-zero rows of w1. ---
    x = x_ref[...]                                                        # (TP, 128)
    h = jnp.dot(x, w1_ref[...], preferred_element_type=jnp.float32) + b1_ref[...]
    h = jnp.maximum(h, 0.0)

    # --- merged cls+reg head: one (128 -> 256) matmul ---
    z = jnp.dot(h, w2_ref[...], preferred_element_type=jnp.float32) + b2_ref[...]
    logits = z[:, :LANE]          # class logits at lanes [0, K)
    reg = z[:, LANE:]             # reg plane, already divided by BBOX_REG_WEIGHTS

    # --- masked stable softmax over lanes [0, K) ---
    lane = jax.lax.broadcasted_iota(jnp.int32, logits.shape, 1)
    valid = lane < K
    m = jnp.max(jnp.where(valid, logits, -jnp.inf), axis=1, keepdims=True)
    e = jnp.where(valid, jnp.exp(logits - m), 0.0)
    s = jnp.sum(e, axis=1, keepdims=True)
    r = pl.reciprocal(s, approx=True)            # EUP slot
    r = r * (2.0 - s * r)                        # one Newton step -> near-exact divide
    probs = e * r                                # zero outside [0, K)

    # --- bbox decode: one exp covers both dw and dh halves of the reg plane ---
    ed = jnp.exp(jnp.minimum(reg, _MAX_OFFSET))                  # clamp(max=) for dw/dh
    dx = reg                                                     # lanes [0,K)
    dy = pltpu.roll(reg, LANE - 1 * REG_STRIDE, axis=1)          # lane 32 -> lane 0
    exp_dw = pltpu.roll(ed, LANE - 2 * REG_STRIDE, axis=1)       # lane 64 -> lane 0
    exp_dh = pltpu.roll(ed, LANE - 3 * REG_STRIDE, axis=1)       # lane 96 -> lane 0

    # geometry lanes folded into the x slab
    px1 = x[:, GEOM_BASE + 0:GEOM_BASE + 1]
    py1 = x[:, GEOM_BASE + 1:GEOM_BASE + 2]
    px2 = x[:, GEOM_BASE + 2:GEOM_BASE + 3]
    py2 = x[:, GEOM_BASE + 3:GEOM_BASE + 4]
    wmax = x[:, GEOM_BASE + 4:GEOM_BASE + 5] - 1.0               # image width  - 1
    hmax = x[:, GEOM_BASE + 5:GEOM_BASE + 6] - 1.0               # image height - 1

    ws = px2 - px1 + 1.0
    hs = py2 - py1 + 1.0
    xc = px1 + 0.5 * ws + dx * ws
    yc = py1 + 0.5 * hs + dy * hs
    wnew = ws * exp_dw
    hnew = hs * exp_dh

    x1 = jnp.clip(xc - 0.5 * wnew, 0.0, wmax)
    y1 = jnp.clip(yc - 0.5 * hnew, 0.0, hmax)
    x2 = jnp.clip(xc + 0.5 * wnew - 1.0, 0.0, wmax)
    y2 = jnp.clip(yc + 0.5 * hnew - 1.0, 0.0, hmax)

    # --- pack 5 K-wide chunks into ONE 128-lane block -> single unmasked store ---
    def chunk(v, slot):
        return pltpu.roll(jnp.where(valid, v, 0.0), slot * OUT_STRIDE, axis=1)

    packed = probs + chunk(x1, 1) + chunk(y1, 2) + chunk(x2, 3) + chunk(y2, 4)
    out_ref[...] = packed


def fused_roi(x_slab, w1p, b1p, w2p, b2p, tp):
    p_pad = x_slab.shape[0]
    return pl.pallas_call(
        _fused_roi_kernel,
        out_shape=jax.ShapeDtypeStruct((p_pad, LANE), jnp.float32),
        grid_spec=pltpu.PrefetchScalarGridSpec(
            num_scalar_prefetch=0,
            grid=(p_pad // tp,),
            in_specs=[
                pl.BlockSpec((tp, LANE), lambda i: (i, 0)),         # x slab (features+geom)
                pl.BlockSpec((LANE, LANE), lambda i: (0, 0)),       # w1 (whole)
                pl.BlockSpec((1, LANE), lambda i: (0, 0)),          # b1
                pl.BlockSpec((LANE, 2 * LANE), lambda i: (0, 0)),   # merged w2 (cls|reg)
                pl.BlockSpec((1, 2 * LANE), lambda i: (0, 0)),      # merged b2
            ],
            out_specs=pl.BlockSpec((tp, LANE), lambda i: (i, 0)),
        ),
        compiler_params=pltpu.CompilerParams(
            dimension_semantics=("parallel",)),   # proposal axis -> v7x megacore split
    )(x_slab, w1p, b1p, w2p, b2p)


# --------- one-time host-side weight packing (plane-chunked, scale-folded) ---------
def _prepare_padded_params(params):
    K = NUM_CLASSES
    wx, wy, ww, wh = BBOX_REG_WEIGHTS
    w1 = np.asarray(params["w1"], np.float32)              # (C, HIDDEN)
    b1 = np.asarray(params["b1"], np.float32).reshape(-1)
    wc = np.asarray(params["wc"], np.float32)               # (HIDDEN, K)
    bc = np.asarray(params["bc"], np.float32).reshape(-1)
    wr = np.asarray(params["wr"], np.float32)               # (HIDDEN, 4K), coord-interleaved
    br = np.asarray(params["br"], np.float32).reshape(-1)
    C, H = w1.shape
    assert C <= GEOM_BASE and H <= LANE

    w1p = np.zeros((LANE, LANE), np.float32)
    w1p[:C, :H] = w1                 # rows >= C (incl. geometry lanes 64..69) stay zero
    b1p = np.zeros((1, LANE), np.float32)
    b1p[0, :H] = b1

    w2p = np.zeros((LANE, 2 * LANE), np.float32)
    b2p = np.zeros((1, 2 * LANE), np.float32)
    w2p[:H, :K] = wc
    b2p[0, :K] = bc
    wr_planes = wr.reshape(H, K, 4)                          # [:, c, j] == wr[:, c*4 + j]
    br_planes = br.reshape(K, 4)
    inv_w = np.asarray([1.0 / wx, 1.0 / wy, 1.0 / ww, 1.0 / wh], np.float32)
    for j in range(4):                                       # j: 0=dx 1=dy 2=dw 3=dh
        off = LANE + j * REG_STRIDE
        w2p[:H, off:off + K] = wr_planes[:, :, j] * inv_w[j]  # fold 1/weight into columns
        b2p[0, off:off + K] = br_planes[:, j] * inv_w[j]
    return (jnp.asarray(w1p), jnp.asarray(b1p), jnp.asarray(w2p), jnp.asarray(b2p))


# ---------------- pure-numpy reference (validation of the dense math) ----------------
def _reference_np(x_feat, proposals, sz, params):
    w1 = np.asarray(params["w1"], np.float32); b1 = np.asarray(params["b1"], np.float32).reshape(-1)
    wc = np.asarray(params["wc"], np.float32); bc = np.asarray(params["bc"], np.float32).reshape(-1)
    wr = np.asarray(params["wr"], np.float32); br = np.asarray(params["br"], np.float32).reshape(-1)
    wx, wy, ww, wh = BBOX_REG_WEIGHTS
    h = np.maximum(x_feat @ w1 + b1, 0.0)
    logits = h @ wc + bc
    regs = h @ wr + br
    m = logits.max(axis=1, keepdims=True)
    e = np.exp(logits - m)
    probs = e / e.sum(axis=1, keepdims=True)
    ws = proposals[:, 2] - proposals[:, 0] + 1
    hs = proposals[:, 3] - proposals[:, 1] + 1
    xctr = proposals[:, 0] + 0.5 * ws
    yctr = proposals[:, 1] + 0.5 * hs
    dx = regs[:, 0::4] / wx
    dy = regs[:, 1::4] / wy
    dw = np.minimum(regs[:, 2::4] / ww, _MAX_OFFSET)
    dh = np.minimum(regs[:, 3::4] / wh, _MAX_OFFSET)
    xc = xctr[:, None] + dx * ws[:, None]
    yc = yctr[:, None] + dy * hs[:, None]
    wn = ws[:, None] * np.exp(dw)
    hn = hs[:, None] * np.exp(dh)
    wmax = (sz[:, 1] - 1.0)[:, None]
    hmax = (sz[:, 0] - 1.0)[:, None]
    x1 = np.clip(xc - 0.5 * wn, 0.0, wmax)
    y1 = np.clip(yc - 0.5 * hn, 0.0, hmax)
    x2 = np.clip(xc + 0.5 * wn - 1.0, 0.0, wmax)
    y2 = np.clip(yc + 0.5 * hn - 1.0, 0.0, hmax)
    return probs, x1, y1, x2, y2


# ---------------- host-side NMS (dynamic shapes) ----------------
def _iou_np(area, boxes, i):
    x_tl = np.maximum(boxes[i, 0], boxes[i + 1:, 0])
    y_tl = np.maximum(boxes[i, 1], boxes[i + 1:, 1])
    x_br = np.minimum(boxes[i, 2], boxes[i + 1:, 2])
    y_br = np.minimum(boxes[i, 3], boxes[i + 1:, 3])
    inter = np.clip(x_br - x_tl + 1, 0, None) * np.clip(y_br - y_tl + 1, 0, None)
    return inter / (area[i] + area[i + 1:] - inter)


def _nms_np(boxes, probs, thresh):
    order = np.argsort(-probs, kind="stable")
    boxes = boxes[order]
    probs = probs[order].copy()
    area = (boxes[:, 2] - boxes[:, 0] + 1) * (boxes[:, 3] - boxes[:, 1] + 1)
    keep = []
    n = boxes.shape[0]
    for i in range(n):
        if probs[i] > 0:
            if i != n - 1:
                ious = _iou_np(area, boxes, i)
                probs[i + 1:][ious > thresh] = -1
            keep.append(i)
    keep = np.asarray(keep, dtype=np.int64)
    return order[keep]


def _choose_row_tile(p):
    # Small/medium P: a single tile at 8-row granularity (meets the (8,128) min).
    if p <= 512:
        return _round_up(max(p, 8), 8)
    # Large P: 512-row tiles — multiple of 256 (fills the 2x256 MXU rows on
    # v6e/v7x, still 128-granular for v5e), guarantees >= 2 grid steps so the
    # "parallel" proposal axis shards across v7x's two TensorCores, and keeps
    # double-buffered in/out slabs ~1 MiB (well inside v7x's 64 MiB VMEM).
    return 512


# ---------------- BoxRoI.forward (eval path) ----------------
def box_roi_forward(features, proposals_list, sizes, params, validate=False):
    K = NUM_CLASSES

    # --- RoIHead (simplified) ---
    # TODO(synk): RoIHead's RoIAlign is not defined in the provided module;
    # approximated here by per-image global average pooling of the first FPN level.
    feat = features[0]                          # (N, C, H, W), NCHW
    pooled = jnp.mean(feat, axis=(2, 3))        # (N, C)
    per_img = [int(p.shape[0]) for p in proposals_list]
    img_ids = np.concatenate([np.full(n, i, np.int32) for i, n in enumerate(per_img)])
    P = int(img_ids.shape[0])

    tp = _choose_row_tile(P)
    p_pad = _round_up(P, tp)

    # --- single lane-dense input slab: features + geometry in one 128-lane row ---
    x = pooled[img_ids]                                                   # (P, C)
    C = int(x.shape[1])
    proposals = jnp.concatenate(proposals_list, axis=0).astype(jnp.float32)  # (P, 4)
    sz = sizes[img_ids].astype(jnp.float32)                               # (P, 2) = (h, w)

    x_slab = jnp.zeros((p_pad, LANE), jnp.float32)
    x_slab = x_slab.at[:P, :C].set(x)
    x_slab = x_slab.at[:P, GEOM_BASE:GEOM_BASE + 4].set(proposals)
    x_slab = x_slab.at[:P, GEOM_BASE + 4].set(sz[:, 1])                   # image width
    x_slab = x_slab.at[:P, GEOM_BASE + 5].set(sz[:, 0])                   # image height
    if p_pad > P:                                   # padding rows: size 1 -> clip bounds never inverted
        x_slab = x_slab.at[P:, GEOM_BASE + 4:GEOM_BASE + 6].set(1.0)

    w1p, b1p, w2p, b2p = _prepare_padded_params(params)

    # --- single fused Pallas kernel; slice useful rows on device before D2H ---
    slab = fused_roi(x_slab, w1p, b1p, w2p, b2p, tp)                      # (p_pad, 128)
    slab = np.asarray(jax.block_until_ready(slab[:P]))                    # (P, 128)

    probs_np = slab[:, 0 * OUT_STRIDE:0 * OUT_STRIDE + K]
    x1_np = slab[:, 1 * OUT_STRIDE:1 * OUT_STRIDE + K]
    y1_np = slab[:, 2 * OUT_STRIDE:2 * OUT_STRIDE + K]
    x2_np = slab[:, 3 * OUT_STRIDE:3 * OUT_STRIDE + K]
    y2_np = slab[:, 4 * OUT_STRIDE:4 * OUT_STRIDE + K]

    if validate:
        rp, rx1, ry1, rx2, ry2 = _reference_np(
            np.asarray(x, np.float32), np.asarray(proposals, np.float32),
            np.asarray(sz, np.float32), params)
        np.testing.assert_allclose(probs_np, rp, rtol=5e-2, atol=5e-2)
        np.testing.assert_allclose(x1_np, rx1, rtol=5e-2, atol=5e-2)
        np.testing.assert_allclose(y1_np, ry1, rtol=5e-2, atol=5e-2)
        np.testing.assert_allclose(x2_np, rx2, rtol=5e-2, atol=5e-2)
        np.testing.assert_allclose(y2_np, ry2, rtol=5e-2, atol=5e-2)

    # --- per-image / per-class filtering + NMS (host-side, dynamic shapes) ---
    det_boxes, det_probs, det_labels = [], [], []
    start = 0
    for n in per_img:
        sl = slice(start, start + n)
        start += n
        prob = probs_np[sl]
        bx1, by1, bx2, by2 = x1_np[sl], y1_np[sl], x2_np[sl], y2_np[sl]
        bpi, ppi, lpi = [], [], []
        for c in range(1, K):
            ind = np.nonzero(prob[:, c] > PROB_THRESHOLD)[0]
            if ind.shape[0] == 0:
                continue
            pfc = prob[ind, c]
            bfc = np.stack([bx1[ind, c], by1[ind, c], bx2[ind, c], by2[ind, c]], axis=1)
            keep = _nms_np(bfc, pfc, NMS_THRESHOLD)
            bfc, pfc = bfc[keep], pfc[keep]
            lfc = np.full((bfc.shape[0],), c, dtype=np.int64)
            bpi.append(bfc); ppi.append(pfc); lpi.append(lfc)
        if bpi:
            b = np.concatenate(bpi, 0)
            p = np.concatenate(ppi, 0)
            l = np.concatenate(lpi, 0)
        else:
            b = np.zeros((0, 4), np.float32)
            p = np.zeros((0,), np.float32)
            l = np.zeros((0,), np.int64)
        if b.shape[0] > DETECTIONS_PER_IMAGE:
            order = np.argsort(-p)
            b, p, l = (b[order][:DETECTIONS_PER_IMAGE],
                       p[order][:DETECTIONS_PER_IMAGE],
                       l[order][:DETECTIONS_PER_IMAGE])
        det_boxes.append(b); det_probs.append(p); det_labels.append(l)
    return det_boxes, det_probs, det_labels


if __name__ == "__main__":
    key = jax.random.PRNGKey(0)
    kf, kp1, kp2, kw1, kb1, kwc, kbc, kwr, kbr = jax.random.split(key, 9)

    N, C, H, W = 2, 4, 16, 16       # features: N x C x H x W (NCHW)
    P = 8                           # proposals per image
    features = [jax.random.normal(kf, (N, C, H, W), jnp.float32)]

    def make_props(k, n, h, w):
        k1, k2 = jax.random.split(k)
        xy1 = jax.random.uniform(k1, (n, 2), minval=0.0, maxval=w * 0.5)
        wh = jax.random.uniform(k2, (n, 2), minval=1.0, maxval=w * 0.5)
        return jnp.concatenate([xy1, xy1 + wh], axis=1).astype(jnp.float32)

    proposals = [make_props(kp1, P, H, W), make_props(kp2, P, H, W)]
    sizes = jnp.array([[H, W], [H, W]], jnp.float32)

    params = {
        "w1": 0.5 * jax.random.normal(kw1, (C, HIDDEN), jnp.float32),
        "b1": 0.1 * jax.random.normal(kb1, (1, HIDDEN), jnp.float32),
        "wc": 0.5 * jax.random.normal(kwc, (HIDDEN, NUM_CLASSES), jnp.float32),
        "bc": 0.1 * jax.random.normal(kbc, (1, NUM_CLASSES), jnp.float32),
        "wr": 0.2 * jax.random.normal(kwr, (HIDDEN, 4 * NUM_CLASSES), jnp.float32),
        "br": 0.05 * jax.random.normal(kbr, (1, 4 * NUM_CLASSES), jnp.float32),
    }

    det_boxes, det_probs, det_labels = box_roi_forward(
        features, proposals, sizes, params, validate=True)
    for b, p, l in zip(det_boxes, det_probs, det_labels):
        assert b.shape[0] == p.shape[0] == l.shape[0]
        assert b.ndim == 2 and b.shape[1] == 4
        assert np.all(np.isfinite(b)) and np.all(np.isfinite(p))
    print("KERNEL_OK")
</pallas_src>

<mosaic_0001>
module attributes {stable_mosaic.version = 11 : i64} {
  func.func @_fused_roi_kernel(%arg0: i32, %arg1: memref<16x128xf32, #tpu.memory_space<vmem>>, %arg2: memref<128x128xf32, #tpu.memory_space<vmem>>, %arg3: memref<1x128xf32, #tpu.memory_space<vmem>>, %arg4: memref<128x256xf32, #tpu.memory_space<vmem>>, %arg5: memref<1x256xf32, #tpu.memory_space<vmem>>, %arg6: memref<16x128xf32, #tpu.memory_space<vmem>>) attributes {dimension_semantics = [#tpu.dimension_semantics<parallel>], iteration_bounds = array<i64: 1>, scalar_prefetch = 0 : i64, scratch_operands = 0 : i64, tpu.core_type = #tpu.core_type<tc>, window_params = [{transform_indices = @transform_0, window_bounds = array<i64: 16, 128>}, {pipeline_mode = #tpu.pipeline_mode<synchronous>, transform_indices = @transform_1, window_bounds = array<i64: 128, 128>}, {pipeline_mode = #tpu.pipeline_mode<synchronous>, transform_indices = @transform_2, window_bounds = array<i64: 1, 128>}, {pipeline_mode = #tpu.pipeline_mode<synchronous>, transform_indices = @transform_3, window_bounds = array<i64: 128, 256>}, {pipeline_mode = #tpu.pipeline_mode<synchronous>, transform_indices = @transform_4, window_bounds = array<i64: 1, 256>}, {transform_indices = @transform_5, window_bounds = array<i64: 16, 128>}]} {
    %c0 = arith.constant 0 : index
    %c0_0 = arith.constant 0 : index
    %0 = vector.load %arg1[%c0, %c0_0] : memref<16x128xf32, #tpu.memory_space<vmem>>, vector<16x128xf32>
    %c0_1 = arith.constant 0 : index
    %c0_2 = arith.constant 0 : index
    %1 = vector.load %arg2[%c0_1, %c0_2] : memref<128x128xf32, #tpu.memory_space<vmem>>, vector<128x128xf32>
    %cst = arith.constant dense<0.000000e+00> : vector<16x128xf32>
    %2 = tpu.matmul %0, %1, %cst {dimension_numbers = #tpu.dot_dimension_numbers<[1], [0], [0], [1], [0, 0, 1, 1], [], []>} : vector<16x128xf32>, vector<128x128xf32>, vector<16x128xf32> -> vector<16x128xf32>
    %c0_3 = arith.constant 0 : index
    %c0_4 = arith.constant 0 : index
    %3 = vector.load %arg3[%c0_3, %c0_4] : memref<1x128xf32, #tpu.memory_space<vmem>>, vector<1x128xf32>
    %4 = vector.broadcast %3 : vector<1x128xf32> to vector<16x128xf32>
    %5 = arith.addf %2, %4 : vector<16x128xf32>
    %cst_5 = arith.constant 0.000000e+00 : f32
    %6 = vector.broadcast %cst_5 : f32 to vector<16x128xf32>
    %7 = arith.maximumf %5, %6 : vector<16x128xf32>
    %c0_6 = arith.constant 0 : index
    %c0_7 = arith.constant 0 : index
    %8 = vector.load %arg4[%c0_6, %c0_7] : memref<128x256xf32, #tpu.memory_space<vmem>>, vector<128x256xf32>
    %cst_8 = arith.constant dense<0.000000e+00> : vector<16x256xf32>
    %9 = tpu.matmul %7, %8, %cst_8 {dimension_numbers = #tpu.dot_dimension_numbers<[1], [0], [0], [1], [0, 0, 1, 1], [], []>} : vector<16x128xf32>, vector<128x256xf32>, vector<16x256xf32> -> vector<16x256xf32>
    %c0_9 = arith.constant 0 : index
    %c0_10 = arith.constant 0 : index
    %10 = vector.load %arg5[%c0_9, %c0_10] : memref<1x256xf32, #tpu.memory_space<vmem>>, vector<1x256xf32>
    %11 = vector.broadcast %10 : vector<1x256xf32> to vector<16x256xf32>
    %12 = arith.addf %9, %11 : vector<16x256xf32>
    %13 = vector.extract_strided_slice %12 {offsets = [0, 0], sizes = [16, 128], strides = [1, 1]} : vector<16x256xf32> to vector<16x128xf32>
    %14 = vector.extract_strided_slice %12 {offsets = [0, 128], sizes = [16, 128], strides = [1, 1]} : vector<16x256xf32> to vector<16x128xf32>
    %15 = tpu.iota {dimensions = array<i32: 1>} : vector<16x128xi32>
    %c5_i32 = arith.constant 5 : i32
    %16 = vector.broadcast %c5_i32 : i32 to vector<16x128xi32>
    %17 = arith.cmpi slt, %15, %16 : vector<16x128xi32>
    %cst_11 = arith.constant 0xFF800000 : f32
    %18 = vector.broadcast %cst_11 : f32 to vector<16x128xf32>
    %19 = arith.select %17, %13, %18 : vector<16x128xi1>, vector<16x128xf32>
    %cst_12 = arith.constant dense<0xFF800000> : vector<16xf32>
    %20 = vector.multi_reduction <maximumf>, %19, %cst_12 [1] : vector<16x128xf32> to vector<16xf32>
    %21 = vector.shape_cast %20 : vector<16xf32> to vector<16x1xf32>
    %22 = vector.broadcast %21 : vector<16x1xf32> to vector<16x128xf32>
    %23 = arith.subf %13, %22 : vector<16x128xf32>
    %24 = math.exp %23 : vector<16x128xf32>
    %cst_13 = arith.constant 0.000000e+00 : f32
    %25 = vector.broadcast %cst_13 : f32 to vector<16x128xf32>
    %26 = arith.select %17, %24, %25 : vector<16x128xi1>, vector<16x128xf32>
    %cst_14 = arith.constant dense<0.000000e+00> : vector<16xf32>
    %27 = vector.multi_reduction <add>, %26, %cst_14 [1] : vector<16x128xf32> to vector<16xf32>
    %28 = vector.shape_cast %27 : vector<16xf32> to vector<16x1xf32>
    %29 = tpu.reciprocal %28 {approx = true} : vector<16x1xf32> -> vector<16x1xf32>
    %30 = arith.mulf %28, %29 : vector<16x1xf32>
    %cst_15 = arith.constant 2.000000e+00 : f32
    %31 = vector.broadcast %cst_15 : f32 to vector<16x1xf32>
    %32 = arith.subf %31, %30 : vector<16x1xf32>
    %33 = arith.mulf %29, %32 : vector<16x1xf32>
    %34 = vector.broadcast %33 : vector<16x1xf32> to vector<16x128xf32>
    %35 = arith.mulf %26, %34 : vector<16x128xf32>
    %cst_16 = arith.constant 4.13516665 : f32
    %36 = vector.broadcast %cst_16 : f32 to vector<16x128xf32>
    %37 = arith.minimumf %14, %36 : vector<16x128xf32>
    %38 = math.exp %37 : vector<16x128xf32>
    %c96_i32 = arith.constant 96 : i32
    %39 = tpu.dynamic_rotate %14 by %c96_i32 dim 1 : vector<16x128xf32>, i32 -> vector<16x128xf32>
    %c64_i32 = arith.constant 64 : i32
    %40 = tpu.dynamic_rotate %38 by %c64_i32 dim 1 : vector<16x128xf32>, i32 -> vector<16x128xf32>
    %c32_i32 = arith.constant 32 : i32
    %41 = tpu.dynamic_rotate %38 by %c32_i32 dim 1 : vector<16x128xf32>, i32 -> vector<16x128xf32>
    %42 = vector.extract_strided_slice %0 {offsets = [0, 64], sizes = [16, 1], strides = [1, 1]} : vector<16x128xf32> to vector<16x1xf32>
    %43 = vector.extract_strided_slice %0 {offsets = [0, 65], sizes = [16, 1], strides = [1, 1]} : vector<16x128xf32> to vector<16x1xf32>
    %44 = vector.extract_strided_slice %0 {offsets = [0, 66], sizes = [16, 1], strides = [1, 1]} : vector<16x128xf32> to vector<16x1xf32>
    %45 = vector.extract_strided_slice %0 {offsets = [0, 67], sizes = [16, 1], strides = [1, 1]} : vector<16x128xf32> to vector<16x1xf32>
    %46 = vector.extract_strided_slice %0 {offsets = [0, 68], sizes = [16, 1], strides = [1, 1]} : vector<16x128xf32> to vector<16x1xf32>
    %cst_17 = arith.constant 1.000000e+00 : f32
    %47 = vector.broadcast %cst_17 : f32 to vector<16x1xf32>
    %48 = arith.subf %46, %47 : vector<16x1xf32>
    %49 = vector.extract_strided_slice %0 {offsets = [0, 69], sizes = [16, 1], strides = [1, 1]} : vector<16x128xf32> to vector<16x1xf32>
    %cst_18 = arith.constant 1.000000e+00 : f32
    %50 = vector.broadcast %cst_18 : f32 to vector<16x1xf32>
    %51 = arith.subf %49, %50 : vector<16x1xf32>
    %52 = arith.subf %44, %42 : vector<16x1xf32>
    %cst_19 = arith.constant 1.000000e+00 : f32
    %53 = vector.broadcast %cst_19 : f32 to vector<16x1xf32>
    %54 = arith.addf %52, %53 : vector<16x1xf32>
    %55 = arith.subf %45, %43 : vector<16x1xf32>
    %cst_20 = arith.constant 1.000000e+00 : f32
    %56 = vector.broadcast %cst_20 : f32 to vector<16x1xf32>
    %57 = arith.addf %55, %56 : vector<16x1xf32>
    %cst_21 = arith.constant 5.000000e-01 : f32
    %58 = vector.broadcast %cst_21 : f32 to vector<16x1xf32>
    %59 = arith.mulf %58, %54 : vector<16x1xf32>
    %60 = arith.addf %42, %59 : vector<16x1xf32>
    %61 = vector.broadcast %54 : vector<16x1xf32> to vector<16x128xf32>
    %62 = arith.mulf %14, %61 : vector<16x128xf32>
    %63 = vector.broadcast %60 : vector<16x1xf32> to vector<16x128xf32>
    %64 = arith.addf %63, %62 : vector<16x128xf32>
    %cst_22 = arith.constant 5.000000e-01 : f32
    %65 = vector.broadcast %cst_22 : f32 to vector<16x1xf32>
    %66 = arith.mulf %65, %57 : vector<16x1xf32>
    %67 = arith.addf %43, %66 : vector<16x1xf32>
    %68 = vector.broadcast %57 : vector<16x1xf32> to vector<16x128xf32>
    %69 = arith.mulf %39, %68 : vector<16x128xf32>
    %70 = vector.broadcast %67 : vector<16x1xf32> to vector<16x128xf32>
    %71 = arith.addf %70, %69 : vector<16x128xf32>
    %72 = vector.broadcast %54 : vector<16x1xf32> to vector<16x128xf32>
    %73 = arith.mulf %72, %40 : vector<16x128xf32>
    %74 = vector.broadcast %57 : vector<16x1xf32> to vector<16x128xf32>
    %75 = arith.mulf %74, %41 : vector<16x128xf32>
    %cst_23 = arith.constant 5.000000e-01 : f32
    %76 = vector.broadcast %cst_23 : f32 to vector<16x128xf32>
    %77 = arith.mulf %76, %73 : vector<16x128xf32>
    %78 = arith.subf %64, %77 : vector<16x128xf32>
    %cst_24 = arith.constant 0.000000e+00 : f32
    %79 = vector.broadcast %cst_24 : f32 to vector<16x128xf32>
    %80 = arith.maximumf %79, %78 : vector<16x128xf32>
    %81 = vector.broadcast %48 : vector<16x1xf32> to vector<16x128xf32>
    %82 = arith.minimumf %81, %80 : vector<16x128xf32>
    %cst_25 = arith.constant 5.000000e-01 : f32
    %83 = vector.broadcast %cst_25 : f32 to vector<16x128xf32>
    %84 = arith.mulf %83, %75 : vector<16x128xf32>
    %85 = arith.subf %71, %84 : vector<16x128xf32>
    %cst_26 = arith.constant 0.000000e+00 : f32
    %86 = vector.broadcast %cst_26 : f32 to vector<16x128xf32>
    %87 = arith.maximumf %86, %85 : vector<16x128xf32>
    %88 = vector.broadcast %51 : vector<16x1xf32> to vector<16x128xf32>
    %89 = arith.minimumf %88, %87 : vector<16x128xf32>
    %cst_27 = arith.constant 5.000000e-01 : f32
    %90 = vector.broadcast %cst_27 : f32 to vector<16x128xf32>
    %91 = arith.mulf %90, %73 : vector<16x128xf32>
    %92 = arith.addf %64, %91 : vector<16x128xf32>
    %cst_28 = arith.constant 1.000000e+00 : f32
    %93 = vector.broadcast %cst_28 : f32 to vector<16x128xf32>
    %94 = arith.subf %92, %93 : vector<16x128xf32>
    %cst_29 = arith.constant 0.000000e+00 : f32
    %95 = vector.broadcast %cst_29 : f32 to vector<16x128xf32>
    %96 = arith.maximumf %95, %94 : vector<16x128xf32>
    %97 = vector.broadcast %48 : vector<16x1xf32> to vector<16x128xf32>
    %98 = arith.minimumf %97, %96 : vector<16x128xf32>
    %cst_30 = arith.constant 5.000000e-01 : f32
    %99 = vector.broadcast %cst_30 : f32 to vector<16x128xf32>
    %100 = arith.mulf %99, %75 : vector<16x128xf32>
    %101 = arith.addf %71, %100 : vector<16x128xf32>
    %cst_31 = arith.constant 1.000000e+00 : f32
    %102 = vector.broadcast %cst_31 : f32 to vector<16x128xf32>
    %103 = arith.subf %101, %102 : vector<16x128xf32>
    %cst_32 = arith.constant 0.000000e+00 : f32
    %104 = vector.broadcast %cst_32 : f32 to vector<16x128xf32>
    %105 = arith.maximumf %104, %103 : vector<16x128xf32>
    %106 = vector.broadcast %51 : vector<16x1xf32> to vector<16x128xf32>
    %107 = arith.minimumf %106, %105 : vector<16x128xf32>
    %cst_33 = arith.constant 0.000000e+00 : f32
    %108 = vector.broadcast %cst_33 : f32 to vector<16x128xf32>
    %109 = arith.select %17, %82, %108 : vector<16x128xi1>, vector<16x128xf32>
    %c16_i32 = arith.constant 16 : i32
    %110 = tpu.dynamic_rotate %109 by %c16_i32 dim 1 : vector<16x128xf32>, i32 -> vector<16x128xf32>
    %111 = arith.addf %35, %110 : vector<16x128xf32>
    %cst_34 = arith.constant 0.000000e+00 : f32
    %112 = vector.broadcast %cst_34 : f32 to vector<16x128xf32>
    %113 = arith.select %17, %89, %112 : vector<16x128xi1>, vector<16x128xf32>
    %c32_i32_35 = arith.constant 32 : i32
    %114 = tpu.dynamic_rotate %113 by %c32_i32_35 dim 1 : vector<16x128xf32>, i32 -> vector<16x128xf32>
    %115 = arith.addf %111, %114 : vector<16x128xf32>
    %cst_36 = arith.constant 0.000000e+00 : f32
    %116 = vector.broadcast %cst_36 : f32 to vector<16x128xf32>
    %117 = arith.select %17, %98, %116 : vector<16x128xi1>, vector<16x128xf32>
    %c48_i32 = arith.constant 48 : i32
    %118 = tpu.dynamic_rotate %117 by %c48_i32 dim 1 : vector<16x128xf32>, i32 -> vector<16x128xf32>
    %119 = arith.addf %115, %118 : vector<16x128xf32>
    %cst_37 = arith.constant 0.000000e+00 : f32
    %120 = vector.broadcast %cst_37 : f32 to vector<16x128xf32>
    %121 = arith.select %17, %107, %120 : vector<16x128xi1>, vector<16x128xf32>
    %c64_i32_38 = arith.constant 64 : i32
    %122 = tpu.dynamic_rotate %121 by %c64_i32_38 dim 1 : vector<16x128xf32>, i32 -> vector<16x128xf32>
    %123 = arith.addf %119, %122 : vector<16x128xf32>
    %c0_39 = arith.constant 0 : index
    %c0_40 = arith.constant 0 : index
    %124 = vector.load %arg6[%c0_39, %c0_40] : memref<16x128xf32, #tpu.memory_space<vmem>>, vector<16x128xf32>
    tpu.vector_store %arg6[%c0_39, %c0_40], %123 {strides = array<i32>} : memref<16x128xf32, #tpu.memory_space<vmem>>, vector<16x128xf32>,
    return
  }
  func.func @transform_0(%arg0: i32) -> (i32, i32) {
    %c0_i32 = arith.constant 0 : i32
    %c0_i32_0 = arith.constant 0 : i32
    return %arg0, %c0_i32 : i32, i32
  }
  func.func @transform_1(%arg0: i32) -> (i32, i32) {
    %c0_i32 = arith.constant 0 : i32
    %c0_i32_0 = arith.constant 0 : i32
    %c0_i32_1 = arith.constant 0 : i32
    return %c0_i32, %c0_i32_0 : i32, i32
  }
  func.func @transform_2(%arg0: i32) -> (i32, i32) {
    %c0_i32 = arith.constant 0 : i32
    %c0_i32_0 = arith.constant 0 : i32
    %c0_i32_1 = arith.constant 0 : i32
    return %c0_i32, %c0_i32_0 : i32, i32
  }
  func.func @transform_3(%arg0: i32) -> (i32, i32) {
    %c0_i32 = arith.constant 0 : i32
    %c0_i32_0 = arith.constant 0 : i32
    %c0_i32_1 = arith.constant 0 : i32
    return %c0_i32, %c0_i32_0 : i32, i32
  }
  func.func @transform_4(%arg0: i32) -> (i32, i32) {
    %c0_i32 = arith.constant 0 : i32
    %c0_i32_0 = arith.constant 0 : i32
    %c0_i32_1 = arith.constant 0 : i32
    return %c0_i32, %c0_i32_0 : i32, i32
  }
  func.func @transform_5(%arg0: i32) -> (i32, i32) {
    %c0_i32 = arith.constant 0 : i32
    %c0_i32_0 = arith.constant 0 : i32
    return %arg0, %c0_i32 : i32, i32
  }
}

</mosaic_0001>

<llo_original>
// kernel: tpu_custom_call.1
$region0: #{tpu_custom_call.1}
  #allocation0 [shape = 'u32[]', space=smem, size = 0x4, offset = 0x4, fixed_abs, tag = 'smem constant byte address 0x4 - core index']
  #allocation1 [shape = 'u32[72,128]{1,0:T(1,128)}', space=vmem, size = 0x9000, scoped, tag = 'internal scratch']
  %s0 = inlined_call_operand.hbm [shape: f32[16,128], index: 0, kind: input, shape index: {}]
  %s1 = inlined_call_operand.hbm [shape: f32[128,128], index: 1, kind: input, shape index: {}]
  %s2 = inlined_call_operand.vmem [shape: f32[1,128], index: 2, kind: input, shape index: {}]
  %s3 = inlined_call_operand.hbm [shape: f32[128,256], index: 3, kind: input, shape index: {}]
  %s4 = inlined_call_operand.vmem [shape: f32[1,256], index: 4, kind: input, shape index: {}]
  %s5 = inlined_call_operand.hbm [shape: f32[16,128], index: 5, kind: output, shape index: {}]
  %s6 = sld [smem:[#allocation0]]
  $region42: #{tpu_custom_call.1} parent=0
    _
  %s8 = ssub.s32 1, %s6
  %s9 = scalar_select 0, %s8, %s6
  $region1: #{tpu_custom_call.1} parent=0
    #allocation2 [shape = 'u8[8192]{0}', space=vmem, size = 0x2000, scoped, tag = 'input window, operand 0, single buffered']
    #allocation3 [shape = 's32[1]{0}', space=sflag, size = 0x4, scoped, tag = 'scoped memory for tpu_custom_call.1']
    #allocation4 [shape = 's32[1]{0}', space=sflag, size = 0x4, scoped, tag = 'scoped memory for tpu_custom_call.1']
    #allocation5 [shape = 'u8[65536]{0}', space=vmem, size = 0x10000, scoped, tag = 'input window, operand 1, single buffered']
    #allocation6 [shape = 's32[1]{0}', space=sflag, size = 0x4, scoped, tag = 'scoped memory for tpu_custom_call.1']
    #allocation7 [shape = 'u8[131072]{0}', space=vmem, size = 0x20000, scoped, tag = 'input window, operand 3, single buffered']
    #allocation8 [shape = 'u8[8192]{0}', space=vmem, size = 0x2000, scoped, tag = 'output window, operand 0, single buffered']
    %10 = vsyncpa [#allocation3], 0
    %11 = vsyncpa [#allocation6], 0
    %12 = vsyncpa [#allocation4], 0
    // Predicated region
    $region2: #{tpu_custom_call.1} parent=1 // pred_check
      _
    $region3: #{tpu_custom_call.1} parent=1 // pred_check_branch
      %14 = sbr.rel (0) target = $region5
    $region4: #{tpu_custom_call.1} parent=1 // pred_region
      %16 = vsyncadd [#allocation3], 0
      %s17 = sshll.u32 %s0, 4
      %s18 = int_to_ptr.hbm [resolvable:$true] %s17
      %s19 = sshll.u32 [#allocation2], 4
      %s20 = int_to_ptr.vmem [resolvable:$true] %s19
      %25 = dma.hbm_to_vmem [thread:$0]  %s18, 256, %s20, [#allocation3], 128, 128, 8
    $region5: #{tpu_custom_call.1} parent=1 // pred_fallthru
      _
    // Predicated region
    $region6: #{tpu_custom_call.1} parent=1 // pred_check
      _
    $region7: #{tpu_custom_call.1} parent=1 // pred_check_branch
      %27 = sbr.rel (0) target = $region9
    $region8: #{tpu_custom_call.1} parent=1 // pred_region
      %29 = vsyncadd [#allocation6], 0
      %s30 = sshll.u32 %s1, 4
      %s31 = int_to_ptr.hbm [resolvable:$true] %s30
      %s32 = sshll.u32 [#allocation5], 4
      %s33 = int_to_ptr.vmem [resolvable:$true] %s32
      %38 = dma.hbm_to_vmem [thread:$0]  %s31, 2048, %s33, [#allocation6], 128, 128, 8
    $region9: #{tpu_custom_call.1} parent=1 // pred_fallthru
      _
    // Predicated region
    $region10: #{tpu_custom_call.1} parent=1 // pred_check
      _
    $region11: #{tpu_custom_call.1} parent=1 // pred_check_branch
      %40 = sbr.rel (0) target = $region13
    $region12: #{tpu_custom_call.1} parent=1 // pred_region
      _
    $region13: #{tpu_custom_call.1} parent=1 // pred_fallthru
      _
    // Predicated region
    $region14: #{tpu_custom_call.1} parent=1 // pred_check
      _
    $region15: #{tpu_custom_call.1} parent=1 // pred_check_branch
      %42 = sbr.rel (0) target = $region17
    $region16: #{tpu_custom_call.1} parent=1 // pred_region
      %44 = vsyncadd [#allocation6], 0
      %s45 = sshll.u32 %s3, 4
      %s46 = int_to_ptr.hbm [resolvable:$true] %s45
      %s47 = sshll.u32 [#allocation7], 4
      %s48 = int_to_ptr.vmem [resolvable:$true] %s47
      %53 = dma.hbm_to_vmem [thread:$0]  %s46, 4096, %s48, [#allocation6], 256, 256, 16
    $region17: #{tpu_custom_call.1} parent=1 // pred_fallthru
      _
    // Predicated region
    $region18: #{tpu_custom_call.1} parent=1 // pred_check
      _
    $region19: #{tpu_custom_call.1} parent=1 // pred_check_branch
      %55 = sbr.rel (0) target = $region21
    $region20: #{tpu_custom_call.1} parent=1 // pred_region
      _
    $region21: #{tpu_custom_call.1} parent=1 // pred_fallthru
      _
    // Predicated region
    $region22: #{tpu_custom_call.1} parent=1 // pred_check
      _
    $region23: #{tpu_custom_call.1} parent=1 // pred_check_branch
      %57 = sbr.rel (0) target = $region25
    $region24: #{tpu_custom_call.1} parent=1 // pred_region
      %59 = dma.done [#allocation3], 256
    $region25: #{tpu_custom_call.1} parent=1 // pred_fallthru
      _
    // Predicated region
    $region26: #{tpu_custom_call.1} parent=1 // pred_check
      _
    $region27: #{tpu_custom_call.1} parent=1 // pred_check_branch
      %61 = sbr.rel (0) target = $region29
    $region28: #{tpu_custom_call.1} parent=1 // pred_region
      %63 = dma.done [#allocation6], 2048
    $region29: #{tpu_custom_call.1} parent=1 // pred_fallthru
      _
    // Predicated region
    $region30: #{tpu_custom_call.1} parent=1 // pred_check
      _
    $region31: #{tpu_custom_call.1} parent=1 // pred_check_branch
      %65 = sbr.rel (0) target = $region33
    $region32: #{tpu_custom_call.1} parent=1 // pred_region
      %67 = dma.done [#allocation6], 4096
    $region33: #{tpu_custom_call.1} parent=1 // pred_fallthru
      _
    %v68 = vld [vmem:[#allocation2] sm:$0xff]
    %v69 = vld [vmem:[#allocation2 + $0x8] sm:$0xff]
    %v70 = vld [vmem:[#allocation5] sm:$0xff]
    %v71 = vld [vmem:[#allocation5 + $0x8] sm:$0xff]
    %v72 = vld [vmem:[#allocation5 + $0x10] sm:$0xff]
    %v73 = vld [vmem:[#allocation5 + $0x18] sm:$0xff]
    %v74 = vld [vmem:[#allocation5 + $0x20] sm:$0xff]
    %v75 = vld [vmem:[#allocation5 + $0x28] sm:$0xff]
    %v76 = vld [vmem:[#allocation5 + $0x30] sm:$0xff]
    %v77 = vld [vmem:[#allocation5 + $0x38] sm:$0xff]
    %v78 = vld [vmem:[#allocation5 + $0x40] sm:$0xff]
    %v79 = vld [vmem:[#allocation5 + $0x48] sm:$0xff]
    %v80 = vld [vmem:[#allocation5 + $0x50] sm:$0xff]
    %v81 = vld [vmem:[#allocation5 + $0x58] sm:$0xff]
    %v82 = vld [vmem:[#allocation5 + $0x60] sm:$0xff]
    %v83 = vld [vmem:[#allocation5 + $0x68] sm:$0xff]
    %v84 = vld [vmem:[#allocation5 + $0x70] sm:$0xff]
    %v85 = vld [vmem:[#allocation5 + $0x78] sm:$0xff]
    %v86 = vld [vmem:[%s2] sm:$0x1]
    %v88 = vperm.slane %v86, 0
    %90 = vmatpush.msra.mxu0 %v85
    %91 = vmatpush.msra.mxu0 %v84
    %92 = vmatpush.msra.mxu0 %v83
    %93 = vmatpush.msra.mxu0 %v82
    %94 = vmatpush.msra.mxu0 %v81
    %95 = vmatpush.msra.mxu0 %v80
    %96 = vmatpush.msra.mxu0 %v79
    %97 = vmatpush.msra.mxu0 %v78
    %98 = vmatpush.msra.mxu0 %v77
    %99 = vmatpush.msra.mxu0 %v76
    %100 = vmatpush.msra.mxu0 %v75
    %101 = vmatpush.msra.mxu0 %v74
    %102 = vmatpush.msra.mxu0 %v73
    %103 = vmatpush.msra.mxu0 %v72
    %104 = vmatpush.msra.mxu0 %v71
    %105 = vmatpush.msra.mxu0 %v70
    %106 = vmatmul.f32.gmra.mxu0 %v68
    %v107 = vpop.f32.mrf.mxu0
    %v108 = vadd.f32 %v88, %v107
    %109 = vmatmul.f32.gmra.mxu0 %v69
    %v110 = vpop.f32.mrf.mxu0
    %v111 = vadd.f32 %v88, %v110
    %112 = vdwg.mxu0
    %v113 = vmax.f32 %v108, 0.0
    %v114 = vmax.f32 %v111, 0.0
    %v115 = vld [vmem:[#allocation7] sm:$0xff]
    %v116 = vld [vmem:[#allocation7 + $0x8] sm:$0xff]
    %v117 = vld [vmem:[#allocation7 + $0x10] sm:$0xff]
    %v118 = vld [vmem:[#allocation7 + $0x18] sm:$0xff]
    %v119 = vld [vmem:[#allocation7 + $0x20] sm:$0xff]
    %v120 = vld [vmem:[#allocation7 + $0x28] sm:$0xff]
    %v121 = vld [vmem:[#allocation7 + $0x30] sm:$0xff]
    %v122 = vld [vmem:[#allocation7 + $0x38] sm:$0xff]
    %v123 = vld [vmem:[#allocation7 + $0x40] sm:$0xff]
    %v124 = vld [vmem:[#allocation7 + $0x48] sm:$0xff]
    %v125 = vld [vmem:[#allocation7 + $0x50] sm:$0xff]
    %v126 = vld [vmem:[#allocation7 + $0x58] sm:$0xff]
    %v127 = vld [vmem:[#allocation7 + $0x60] sm:$0xff]
    %v128 = vld [vmem:[#allocation7 + $0x68] sm:$0xff]
    %v129 = vld [vmem:[#allocation7 + $0x70] sm:$0xff]
    %v130 = vld [vmem:[#allocation7 + $0x78] sm:$0xff]
    %v131 = vld [vmem:[#allocation7 + $0x80] sm:$0xff]
    %v132 = vld [vmem:[#allocation7 + $0x88] sm:$0xff]
    %v133 = vld [vmem:[#allocation7 + $0x90] sm:$0xff]
    %v134 = vld [vmem:[#allocation7 + $0x98] sm:$0xff]
    %v135 = vld [vmem:[#allocation7 + $0xa0] sm:$0xff]
    %v136 = vld [vmem:[#allocation7 + $0xa8] sm:$0xff]
    %v137 = vld [vmem:[#allocation7 + $0xb0] sm:$0xff]
    %v138 = vld [vmem:[#allocation7 + $0xb8] sm:$0xff]
    %v139 = vld [vmem:[#allocation7 + $0xc0] sm:$0xff]
    %v140 = vld [vmem:[#allocation7 + $0xc8] sm:$0xff]
    %v141 = vld [vmem:[#allocation7 + $0xd0] sm:$0xff]
    %v142 = vld [vmem:[#allocation7 + $0xd8] sm:$0xff]
    %v143 = vld [vmem:[#allocation7 + $0xe0] sm:$0xff]
    %v144 = vld [vmem:[#allocation7 + $0xe8] sm:$0xff]
    %v145 = vld [vmem:[#allocation7 + $0xf0] sm:$0xff]
    %v146 = vld [vmem:[#allocation7 + $0xf8] sm:$0xff]
    %v147 = vld [vmem:[%s4] sm:$0x3]
    %v149 = vperm.slane %v147, 0
    %v150 = vperm.slane %v147, 1
    %153 = vmatpush.msra.mxu0 %v145
    %154 = vmatpush.msra.mxu0 %v143
    %155 = vmatpush.msra.mxu0 %v141
    %156 = vmatpush.msra.mxu0 %v139
    %157 = vmatpush.msra.mxu0 %v137
    %158 = vmatpush.msra.mxu0 %v135
    %159 = vmatpush.msra.mxu0 %v133
    %160 = vmatpush.msra.mxu0 %v131
    %161 = vmatpush.msra.mxu0 %v129
    %162 = vmatpush.msra.mxu0 %v127
    %163 = vmatpush.msra.mxu0 %v125
    %164 = vmatpush.msra.mxu0 %v123
    %165 = vmatpush.msra.mxu0 %v121
    %166 = vmatpush.msra.mxu0 %v119
    %167 = vmatpush.msra.mxu0 %v117
    %168 = vmatpush.msra.mxu0 %v115
    %169 = vmatmul.f32.gmra.mxu0 %v113
    %v170 = vpop.f32.mrf.mxu0
    %v171 = vadd.f32 %v149, %v170
    %172 = vmatmul.f32.gmra.mxu0 %v114
    %v173 = vpop.f32.mrf.mxu0
    %v174 = vadd.f32 %v149, %v173
    %175 = vdwg.mxu0
    %176 = vmatpush.msra.mxu0 %v146
    %177 = vmatpush.msra.mxu0 %v144
    %178 = vmatpush.msra.mxu0 %v142
    %179 = vmatpush.msra.mxu0 %v140
    %180 = vmatpush.msra.mxu0 %v138
    %181 = vmatpush.msra.mxu0 %v136
    %182 = vmatpush.msra.mxu0 %v134
    %183 = vmatpush.msra.mxu0 %v132
    %184 = vmatpush.msra.mxu0 %v130
    %185 = vmatpush.msra.mxu0 %v128
    %186 = vmatpush.msra.mxu0 %v126
    %187 = vmatpush.msra.mxu0 %v124
    %188 = vmatpush.msra.mxu0 %v122
    %189 = vmatpush.msra.mxu0 %v120
    %190 = vmatpush.msra.mxu0 %v118
    %191 = vmatpush.msra.mxu0 %v116
    %192 = vmatmul.f32.gmra.mxu0 %v113
    %v193 = vpop.f32.mrf.mxu0
    %v194 = vadd.f32 %v150, %v193
    %195 = vmatmul.f32.gmra.mxu0 %v114
    %v196 = vpop.f32.mrf.mxu0
    %v197 = vadd.f32 %v150, %v196
    %198 = vdwg.mxu0
    %v199 = vlaneseq
    %v200 = vand.u32 %v199, 127
    %vm201 = vcmp.lt.s32.totalorder %v200, 5
    %v202 = vsel %vm201, %v171, -inf
    %v203 = vsel %vm201, %v174, -inf
    %204 = vmax.xlane.f32.xlu0 %v202
    %v205 = vpop.xlane.xlu0 %204
    %206 = vmax.xlane.f32.xlu0 %v203
    %v207 = vpop.xlane.xlu0 %206
    %v208 = vsub.f32 %v171, %v205
    %v209 = vsub.f32 %v174, %v207
    %v210 = vmul.f32 %v208, 1.442695
    %v211 = vpow.pop %v210
    %v212 = vmul.f32 %v209, 1.442695
    %v213 = vpow.pop %v212
    %v214 = vsel %vm201, %v211, 0.0
    %v215 = vsel %vm201, %v213, 0.0
    %216 = vadd.xlane.f32.xlu0 %v214
    %v217 = vpop.xlane.xlu0 %216
    %218 = vadd.xlane.f32.xlu0 %v215
    %v219 = vpop.xlane.xlu0 %218
    %v220 = vrcp.pop %v217
    %v221 = vrcp.pop %v219
    %v222 = vmul.f32 %v217, %v220
    %v223 = vmul.f32 %v219, %v221
    %v224 = vsub.f32 2.0, %v222
    %v225 = vsub.f32 2.0, %v223
    %v226 = vmul.f32 %v220, %v224
    %v227 = vmul.f32 %v221, %v225
    %v228 = vmul.f32 %v214, %v226
    %v229 = vmul.f32 %v215, %v227
    %v230 = vmin.f32 %v194, 4.1351666
    %v231 = vmin.f32 %v197, 4.1351666
    %v232 = vmul.f32 %v230, 1.442695
    %v233 = vpow.pop %v232
    %v234 = vmul.f32 %v231, 1.442695
    %v235 = vpow.pop %v234
    %236 = vrot.lane.b32.xlu0 %v194, 96
    %v237 = vpop.permute.xlu0 %236
    %238 = vrot.lane.b32.xlu0 %v197, 96
    %v239 = vpop.permute.xlu0 %238
    %240 = vrot.lane.b32.xlu0 %v233, 64
    %v241 = vpop.permute.xlu0 %240
    %242 = vrot.lane.b32.xlu0 %v235, 64
    %v243 = vpop.permute.xlu0 %242
    %244 = vrot.lane.b32.xlu0 %v233, 32
    %v245 = vpop.permute.xlu0 %244
    %246 = vrot.lane.b32.xlu0 %v235, 32
    %v247 = vpop.permute.xlu0 %246
    %v248 = vsub.f32 %v68, 1.0
    %v249 = vsub.f32 %v69, 1.0
    %252 = vrot.lane.b32.xlu0 %v68, 2
    %v253 = vpop.permute.xlu0 %252
    %254 = vrot.lane.b32.xlu0 %v69, 2
    %v255 = vpop.permute.xlu0 %254
    %v258 = vsub.f32 %v68, %v253
    %v259 = vsub.f32 %v69, %v255
    %v260 = vadd.f32 %v258, 1.0
    %v261 = vadd.f32 %v259, 1.0
    %v262 = vmul.f32 %v260, 0.5
    %v263 = vmul.f32 %v261, 0.5
    %266 = vrot.lane.b32.xlu0 %v262, 126
    %v267 = vpop.permute.xlu0 %266
    %268 = vrot.lane.b32.xlu0 %v263, 126
    %v269 = vpop.permute.xlu0 %268
    %v272 = vadd.f32 %v68, %v267
    %v273 = vadd.f32 %v69, %v269
    %275 = vset.pattern.permute.xlu0 66
    %276 = vperm.xlu0 %275, %v260
    %v277 = vpop.permute.xlu0 %276
    %280 = vset.pattern.permute.xlu0 66
    %281 = vperm.xlu0 %280, %v261
    %v282 = vpop.permute.xlu0 %281
    %v284 = vmul.f32 %v194, %v277
    %v285 = vmul.f32 %v197, %v282
    %287 = vset.pattern.permute.xlu0 64
    %288 = vperm.xlu0 %287, %v272
    %v289 = vpop.permute.xlu0 %288
    %292 = vset.pattern.permute.xlu0 64
    %293 = vperm.xlu0 %292, %v273
    %v294 = vpop.permute.xlu0 %293
    %v296 = vadd.f32 %v289, %v284
    %v297 = vadd.f32 %v294, %v285
    %298 = vset.pattern.permute.xlu0 67
    %299 = vperm.xlu0 %298, %v260
    %v300 = vpop.permute.xlu0 %299
    %302 = vset.pattern.permute.xlu0 67
    %303 = vperm.xlu0 %302, %v261
    %v304 = vpop.permute.xlu0 %303
    %v306 = vmul.f32 %v237, %v300
    %v307 = vmul.f32 %v239, %v304
    %308 = vset.pattern.permute.xlu0 65
    %309 = vperm.xlu0 %308, %v272
    %v310 = vpop.permute.xlu0 %309
    %312 = vset.pattern.permute.xlu0 65
    %313 = vperm.xlu0 %312, %v273
    %v314 = vpop.permute.xlu0 %313
    %v316 = vadd.f32 %v310, %v306
    %v317 = vadd.f32 %v314, %v307
    %v318 = vmul.f32 %v277, %v241
    %v319 = vmul.f32 %v282, %v243
    %v320 = vmul.f32 %v300, %v245
    %v321 = vmul.f32 %v304, %v247
    %v322 = vmul.f32 %v318, 0.5
    %v323 = vmul.f32 %v319, 0.5
    %v324 = vsub.f32 %v296, %v322
    %v325 = vsub.f32 %v297, %v323
    %v326 = vmax.f32 %v324, 0.0
    %v327 = vmax.f32 %v325, 0.0
    %329 = vset.pattern.permute.xlu0 68
    %330 = vperm.xlu0 %329, %v248
    %v331 = vpop.permute.xlu0 %330
    %334 = vset.pattern.permute.xlu0 68
    %335 = vperm.xlu0 %334, %v249
    %v336 = vpop.permute.xlu0 %335
    %v338 = vmin.f32 %v331, %v326
    %v339 = vmin.f32 %v336, %v327
    %v340 = vmul.f32 %v320, 0.5
    %v341 = vmul.f32 %v321, 0.5
    %v342 = vsub.f32 %v316, %v340
    %v343 = vsub.f32 %v317, %v341
    %v344 = vmax.f32 %v342, 0.0
    %v345 = vmax.f32 %v343, 0.0
    %346 = vset.pattern.permute.xlu0 69
    %347 = vperm.xlu0 %346, %v248
    %v348 = vpop.permute.xlu0 %347
    %350 = vset.pattern.permute.xlu0 69
    %351 = vperm.xlu0 %350, %v249
    %v352 = vpop.permute.xlu0 %351
    %v354 = vmin.f32 %v348, %v344
    %v355 = vmin.f32 %v352, %v345
    %v356 = vadd.f32 %v296, %v322
    %v357 = vadd.f32 %v297, %v323
    %v358 = vsub.f32 %v356, 1.0
    %v359 = vsub.f32 %v357, 1.0
    %v360 = vmax.f32 %v358, 0.0
    %v361 = vmax.f32 %v359, 0.0
    %v362 = vmin.f32 %v331, %v360
    %v363 = vmin.f32 %v336, %v361
    %v364 = vadd.f32 %v316, %v340
    %v365 = vadd.f32 %v317, %v341
    %v366 = vsub.f32 %v364, 1.0
    %v367 = vsub.f32 %v365, 1.0
    %v368 = vmax.f32 %v366, 0.0
    %v369 = vmax.f32 %v367, 0.0
    %v370 = vmin.f32 %v348, %v368
    %v371 = vmin.f32 %v352, %v369
    %v372 = vsel %vm201, %v338, 0.0
    %v373 = vsel %vm201, %v339, 0.0
    %374 = vrot.lane.b32.xlu0 %v372, 16
    %v375 = vpop.permute.xlu0 %374
    %376 = vrot.lane.b32.xlu0 %v373, 16
    %v377 = vpop.permute.xlu0 %376
    %v378 = vadd.f32 %v228, %v375
    %v379 = vadd.f32 %v229, %v377
    %v380 = vsel %vm201, %v354, 0.0
    %v381 = vsel %vm201, %v355, 0.0
    %382 = vrot.lane.b32.xlu0 %v380, 32
    %v383 = vpop.permute.xlu0 %382
    %384 = vrot.lane.b32.xlu0 %v381, 32
    %v385 = vpop.permute.xlu0 %384
    %v386 = vadd.f32 %v378, %v383
    %v387 = vadd.f32 %v379, %v385
    %v388 = vsel %vm201, %v362, 0.0
    %v389 = vsel %vm201, %v363, 0.0
    %390 = vrot.lane.b32.xlu0 %v388, 48
    %v391 = vpop.permute.xlu0 %390
    %392 = vrot.lane.b32.xlu0 %v389, 48
    %v393 = vpop.permute.xlu0 %392
    %v394 = vadd.f32 %v386, %v391
    %v395 = vadd.f32 %v387, %v393
    %v396 = vsel %vm201, %v370, 0.0
    %v397 = vsel %vm201, %v371, 0.0
    %398 = vrot.lane.b32.xlu0 %v396, 64
    %v399 = vpop.permute.xlu0 %398
    %400 = vrot.lane.b32.xlu0 %v397, 64
    %v401 = vpop.permute.xlu0 %400
    %v402 = vadd.f32 %v394, %v399
    %v403 = vadd.f32 %v395, %v401
    %404 = vst [vmem:[#allocation8] sm:$0xff] %v402
    %405 = vst [vmem:[#allocation8 + $0x8] sm:$0xff] %v403
    // Predicated region
    $region34: #{tpu_custom_call.1} parent=1 // pred_check
      _
    $region35: #{tpu_custom_call.1} parent=1 // pred_check_branch
      %407 = sbr.rel (0) target = $region37
    $region36: #{tpu_custom_call.1} parent=1 // pred_region
      %409 = vsyncadd [#allocation4], 0
      %s410 = sshll.u32 [#allocation8], 4
      %s411 = int_to_ptr.vmem [resolvable:$true] %s410
      %s412 = sshll.u32 %s5, 4
      %s413 = int_to_ptr.hbm [resolvable:$true] %s412
      %418 = dma.vmem_to_hbm [thread:$0]  %s411, 256, %s413, [#allocation4], 128, 128, 8
    $region37: #{tpu_custom_call.1} parent=1 // pred_fallthru
      _
    // Predicated region
    $region38: #{tpu_custom_call.1} parent=1 // pred_check
      _
    $region39: #{tpu_custom_call.1} parent=1 // pred_check_branch
      %420 = sbr.rel (0) target = $region41
    $region40: #{tpu_custom_call.1} parent=1 // pred_region
      %422 = dma.done [#allocation4], 256
    $region41: #{tpu_custom_call.1} parent=1 // pred_fallthru
      _
    %423 = vsyncpa [#allocation3], 1
    %424 = vsyncpa [#allocation6], 1
    %425 = vsyncpa [#allocation4], 1

</llo_original>
